<compile_context>
chip_gen: v6e
topology: v6e:2x2x1
jax: 0.10.0
libtpu: 0.0.40
codegen_flags: <defaults>
</compile_context>

<pallas_src>
import functools

import jax
import jax.numpy as jnp
from jax.experimental import pallas as pl
from jax.experimental.pallas import tpu as pltpu


def _conv_du(y, w1t, b1, w2, b2):
    """Squeeze-excite MLP: (nb, C, 1) f32 -> sigmoid scale (nb, C, 1) f32.

    Done off the MXU (far too small for a systolic push): VPU broadcast
    multiplies + sublane/lane reductions.
    """
    h = jnp.sum(w1t * y, axis=1, keepdims=True) + b1      # (nb, 1, Cr)
    h = jnp.maximum(h, 0.0)
    s = jnp.sum(w2 * h, axis=-1, keepdims=True) + b2       # (nb, C, 1)
    return jax.nn.sigmoid(s)


def _ca_fused_kernel(alpha_ref, x_ref, w1t_ref, b1_ref, w2_ref, b2_ref, o_ref):
    """Single-pass path: whole (nb, C, HW) slab resident in VMEM."""
    xf = x_ref[...].astype(jnp.float32)                    # f32 stats even for bf16 x
    alpha = alpha_ref[0]

    avg = jnp.mean(xf, axis=-1, keepdims=True)              # lane (XLU) reductions
    mx = jnp.max(xf, axis=-1, keepdims=True)
    y = alpha * avg + (1.0 - alpha) * mx                     # (nb, C, 1)

    s = _conv_du(y, w1t_ref[...], b1_ref[...], w2_ref[...], b2_ref[...])
    o_ref[...] = (xf * s).astype(o_ref.dtype)                # broadcast along lanes


def _ca_pool_kernel(alpha_ref, x_ref, w1t_ref, b1_ref, w2_ref, b2_ref, s_ref,
                    sum_sc, max_sc, *, hw, thw):
    """Two-pass path, pass 1: accumulate sum/max over HW tiles, emit scale."""
    t = pl.program_id(1)

    @pl.when(t == 0)
    def _():
        sum_sc[...] = jnp.zeros_like(sum_sc)
        max_sc[...] = jnp.full_like(max_sc, -jnp.inf)

    xf = x_ref[...].astype(jnp.float32)                      # (1, C, thw)
    if hw % thw:
        # Tail tile overruns HW: OOB lanes are garbage on read, mask them out.
        lane = t * thw + jax.lax.broadcasted_iota(jnp.int32, xf.shape, 2)
        valid = lane < hw
        xs = jnp.where(valid, xf, 0.0)
        xm = jnp.where(valid, xf, -jnp.inf)
    else:
        xs = xm = xf
    sum_sc[...] += jnp.sum(xs, axis=-1, keepdims=True)
    max_sc[...] = jnp.maximum(max_sc[...], jnp.max(xm, axis=-1, keepdims=True))

    @pl.when(t == pl.num_programs(1) - 1)
    def _():
        alpha = alpha_ref[0]
        y = alpha * (sum_sc[...] * (1.0 / hw)) + (1.0 - alpha) * max_sc[...]
        s_ref[...] = _conv_du(y, w1t_ref[...], b1_ref[...], w2_ref[...],
                              b2_ref[...])


def _ca_rescale_kernel(x_ref, s_ref, o_ref):
    """Two-pass path, pass 2: elementwise channel rescale, lane-dense store."""
    o_ref[...] = (x_ref[...].astype(jnp.float32) * s_ref[...]).astype(o_ref.dtype)


def ca_layer_mixone(x, alpha, w1, b1, w2, b2, *, force_two_pass=False):
    """x: (N, C, H, W). w1: (Cr, C), b1: (Cr,), w2: (C, Cr), b2: (C,)."""
    N, C, H, W = x.shape
    Cr = w1.shape[0]
    HW = H * W

    # Glue: only a free reshape (no transpose); spatial goes on the lane axis.
    x3 = x.reshape(N, C, HW)
    alpha_arr = jnp.asarray(alpha, jnp.float32).reshape(1)   # scalar in SMEM
    w1_t = jnp.asarray(w1, jnp.float32).T                    # (C, Cr), tiny
    b1_2d = jnp.asarray(b1, jnp.float32).reshape(1, Cr)
    w2_2d = jnp.asarray(w2, jnp.float32)                     # (C, Cr)
    b2_2d = jnp.asarray(b2, jnp.float32).reshape(C, 1)

    itemsize = x.dtype.itemsize
    bytes_per_image = C * HW * itemsize
    # Per-block VMEM expansion: in/out double buffers + f32 working copy/temps.
    expand = 6 if itemsize >= 4 else 8
    target_block = 4 * 2**20
    vmem_cap = 48 * 2**20                                     # safe on v5e/v6e/v7x

    single_pass = (not force_two_pass and
                   expand * bytes_per_image + 4 * 2**20 <= vmem_cap)

    if single_pass:
        # Batch elements per grid step: big enough to amortize per-step
        # overhead, small enough to stay inside VMEM with double-buffering.
        nb = min(N, max(1, target_block // bytes_per_image))
        if N >= 2:
            nb = min(nb, max(1, N // 2))       # >=2 steps so both v7x cores work
        while N % nb:
            nb -= 1
        block_bytes = nb * bytes_per_image
        vmem_limit = int(min(vmem_cap,
                             max(32 * 2**20, expand * block_bytes + 4 * 2**20)))

        out3 = pl.pallas_call(
            _ca_fused_kernel,
            out_shape=jax.ShapeDtypeStruct((N, C, HW), x.dtype),
            grid=(N // nb,),
            in_specs=[
                pl.BlockSpec(memory_space=pltpu.MemorySpace.SMEM),    # alpha
                pl.BlockSpec((nb, C, HW), lambda i: (i, 0, 0)),       # x
                pl.BlockSpec((C, Cr), lambda i: (0, 0)),              # w1^T
                pl.BlockSpec((1, Cr), lambda i: (0, 0)),              # b1
                pl.BlockSpec((C, Cr), lambda i: (0, 0)),              # w2
                pl.BlockSpec((C, 1), lambda i: (0, 0)),               # b2
            ],
            out_specs=pl.BlockSpec((nb, C, HW), lambda i: (i, 0, 0)),
            compiler_params=pltpu.CompilerParams(
                dimension_semantics=("parallel",),
                vmem_limit_bytes=vmem_limit),
        )(alpha_arr, x3, w1_t, b1_2d, w2_2d, b2_2d)
        return out3.reshape(N, C, H, W)

    # ---- Two-pass path: H*W too large for a resident slab, tile the lanes ----
    thw = max(128, (target_block // (C * itemsize)) // 128 * 128)
    thw = min(thw, max(128, HW // 128 * 128))       # keep a 128-multiple tile
    n_t = pl.cdiv(HW, thw)

    scale = pl.pallas_call(
        functools.partial(_ca_pool_kernel, hw=HW, thw=thw),
        out_shape=jax.ShapeDtypeStruct((N, C, 1), jnp.float32),
        grid=(N, n_t),
        in_specs=[
            pl.BlockSpec(memory_space=pltpu.MemorySpace.SMEM),        # alpha
            pl.BlockSpec((1, C, thw), lambda n, t: (n, 0, t)),        # x tile
            pl.BlockSpec((C, Cr), lambda n, t: (0, 0)),               # w1^T
            pl.BlockSpec((1, Cr), lambda n, t: (0, 0)),               # b1
            pl.BlockSpec((C, Cr), lambda n, t: (0, 0)),               # w2
            pl.BlockSpec((C, 1), lambda n, t: (0, 0)),                # b2
        ],
        out_specs=pl.BlockSpec((1, C, 1), lambda n, t: (n, 0, 0)),
        scratch_shapes=[pltpu.VMEM((1, C, 1), jnp.float32),           # sum acc
                        pltpu.VMEM((1, C, 1), jnp.float32)],          # max acc
        compiler_params=pltpu.CompilerParams(
            dimension_semantics=("parallel", "arbitrary"),
            vmem_limit_bytes=32 * 2**20),
    )(alpha_arr, x3, w1_t, b1_2d, w2_2d, b2_2d)

    out3 = pl.pallas_call(
        _ca_rescale_kernel,
        out_shape=jax.ShapeDtypeStruct((N, C, HW), x.dtype),
        grid=(N, n_t),
        in_specs=[
            pl.BlockSpec((1, C, thw), lambda n, t: (n, 0, t)),        # x tile
            pl.BlockSpec((1, C, 1), lambda n, t: (n, 0, 0)),          # scale
        ],
        out_specs=pl.BlockSpec((1, C, thw), lambda n, t: (n, 0, t)),
        compiler_params=pltpu.CompilerParams(
            dimension_semantics=("parallel", "parallel"),
            vmem_limit_bytes=32 * 2**20),
    )(x3, scale)
    return out3.reshape(N, C, H, W)


def ca_layer_mixone_ref(x, alpha, w1, b1, w2, b2):
    """Pure-JAX reference matching the PyTorch forward exactly (NCHW)."""
    avg = jnp.mean(x, axis=(2, 3), keepdims=True)
    mx = jnp.max(x, axis=(2, 3), keepdims=True)
    y = alpha * avg + (1 - alpha) * mx                         # (N, C, 1, 1)
    h = jnp.einsum("nchw,oc->nohw", y, w1) + b1[None, :, None, None]
    h = jnp.maximum(h, 0.0)
    s = jax.nn.sigmoid(
        jnp.einsum("nchw,oc->nohw", h, w2) + b2[None, :, None, None])
    return x * s


if __name__ == "__main__":
    # Small shapes consistent with the module: channel=32, reduction=16 -> Cr=2.
    N, C, H, W = 2, 32, 8, 8
    reduction = 16
    Cr = C // reduction

    key = jax.random.PRNGKey(0)
    kx, k1, k2, k3, k4 = jax.random.split(key, 5)
    x = jax.random.normal(kx, (N, C, H, W), dtype=jnp.float32)

    w1 = jax.random.normal(k1, (Cr, C), dtype=jnp.float32) * 0.1   # Conv2d(C, C//r, 1)
    b1 = jax.random.normal(k2, (Cr,), dtype=jnp.float32) * 0.1
    w2 = jax.random.normal(k3, (C, Cr), dtype=jnp.float32) * 0.1   # Conv2d(C//r, C, 1)
    b2 = jax.random.normal(k4, (C,), dtype=jnp.float32) * 0.1
    alpha = jnp.float32(0.75)   # nn.Parameter scalar (torch inits to 1.0)

    # Fused single-pass path.
    out = jax.block_until_ready(ca_layer_mixone(x, alpha, w1, b1, w2, b2))
    ref = ca_layer_mixone_ref(x, alpha, w1, b1, w2, b2)
    assert out.shape == x.shape and out.dtype == x.dtype
    assert jnp.allclose(out, ref, atol=1e-5, rtol=1e-5), "single-pass mismatch"

    # Spatially tiled two-pass path (large-H*W fallback), exercised at a small
    # size with a non-128-multiple tail so the lane masking is covered.
    H2 = W2 = 24
    x2 = jax.random.normal(kx, (N, C, H2, W2), dtype=jnp.float32)
    out2 = jax.block_until_ready(
        ca_layer_mixone(x2, alpha, w1, b1, w2, b2, force_two_pass=True))
    ref2 = ca_layer_mixone_ref(x2, alpha, w1, b1, w2, b2)
    assert out2.shape == x2.shape and out2.dtype == x2.dtype
    assert jnp.allclose(out2, ref2, atol=1e-5, rtol=1e-5), "two-pass mismatch"

    print("KERNEL_OK")
</pallas_src>

<mosaic_0001>
module attributes {stable_mosaic.version = 11 : i64} {
  func.func @_ca_fused_kernel(%arg0: i32, %arg1: memref<1xf32, #tpu.memory_space<smem>>, %arg2: memref<1x32x64xf32, #tpu.memory_space<vmem>>, %arg3: memref<32x2xf32, #tpu.memory_space<vmem>>, %arg4: memref<1x2xf32, #tpu.memory_space<vmem>>, %arg5: memref<32x2xf32, #tpu.memory_space<vmem>>, %arg6: memref<32x1xf32, #tpu.memory_space<vmem>>, %arg7: memref<1x32x64xf32, #tpu.memory_space<vmem>>) attributes {dimension_semantics = [#tpu.dimension_semantics<parallel>], iteration_bounds = array<i64: 2>, scalar_prefetch = 0 : i64, scratch_operands = 0 : i64, tpu.core_type = #tpu.core_type<tc>, window_params = [{transform_indices = @transform_0, window_bounds = array<i64: 1>}, {transform_indices = @transform_1, window_bounds = array<i64: 1, 32, 64>}, {pipeline_mode = #tpu.pipeline_mode<synchronous>, transform_indices = @transform_2, window_bounds = array<i64: 32, 2>}, {pipeline_mode = #tpu.pipeline_mode<synchronous>, transform_indices = @transform_3, window_bounds = array<i64: 1, 2>}, {pipeline_mode = #tpu.pipeline_mode<synchronous>, transform_indices = @transform_4, window_bounds = array<i64: 32, 2>}, {pipeline_mode = #tpu.pipeline_mode<synchronous>, transform_indices = @transform_5, window_bounds = array<i64: 32, 1>}, {transform_indices = @transform_6, window_bounds = array<i64: 1, 32, 64>}]} {
    %c0 = arith.constant 0 : index
    %c0_0 = arith.constant 0 : index
    %c0_1 = arith.constant 0 : index
    %0 = vector.load %arg2[%c0, %c0_0, %c0_1] : memref<1x32x64xf32, #tpu.memory_space<vmem>>, vector<1x32x64xf32>
    %c0_2 = arith.constant 0 : index
    %1 = memref.load %arg1[%c0_2] : memref<1xf32, #tpu.memory_space<smem>>
    %cst = arith.constant dense<0.000000e+00> : vector<1x32xf32>
    %2 = vector.multi_reduction <add>, %0, %cst [2] : vector<1x32x64xf32> to vector<1x32xf32>
    %3 = vector.shape_cast %2 : vector<1x32xf32> to vector<1x32x1xf32>
    %cst_3 = arith.constant 6.400000e+01 : f32
    %4 = vector.broadcast %cst_3 : f32 to vector<1x32x1xf32>
    %5 = arith.divf %3, %4 : vector<1x32x1xf32>
    %cst_4 = arith.constant dense<0xFF800000> : vector<1x32xf32>
    %6 = vector.multi_reduction <maximumf>, %0, %cst_4 [2] : vector<1x32x64xf32> to vector<1x32xf32>
    %7 = vector.shape_cast %6 : vector<1x32xf32> to vector<1x32x1xf32>
    %8 = vector.broadcast %1 : f32 to vector<1x32x1xf32>
    %9 = arith.mulf %8, %5 : vector<1x32x1xf32>
    %cst_5 = arith.constant 1.000000e+00 : f32
    %10 = arith.subf %cst_5, %1 : f32
    %11 = vector.broadcast %10 : f32 to vector<1x32x1xf32>
    %12 = arith.mulf %11, %7 : vector<1x32x1xf32>
    %13 = arith.addf %9, %12 : vector<1x32x1xf32>
    %c0_6 = arith.constant 0 : index
    %c0_7 = arith.constant 0 : index
    %14 = vector.load %arg3[%c0_6, %c0_7] : memref<32x2xf32, #tpu.memory_space<vmem>>, vector<32x2xf32>
    %c0_8 = arith.constant 0 : index
    %c0_9 = arith.constant 0 : index
    %15 = vector.load %arg4[%c0_8, %c0_9] : memref<1x2xf32, #tpu.memory_space<vmem>>, vector<1x2xf32>
    %c0_10 = arith.constant 0 : index
    %c0_11 = arith.constant 0 : index
    %16 = vector.load %arg5[%c0_10, %c0_11] : memref<32x2xf32, #tpu.memory_space<vmem>>, vector<32x2xf32>
    %c0_12 = arith.constant 0 : index
    %c0_13 = arith.constant 0 : index
    %17 = vector.load %arg6[%c0_12, %c0_13] : memref<32x1xf32, #tpu.memory_space<vmem>>, vector<32x1xf32>
    %18 = vector.shape_cast %14 : vector<32x2xf32> to vector<1x32x2xf32>
    %19 = vector.broadcast %13 : vector<1x32x1xf32> to vector<1x32x2xf32>
    %20 = arith.mulf %18, %19 : vector<1x32x2xf32>
    %cst_14 = arith.constant dense<0.000000e+00> : vector<1x2xf32>
    %21 = vector.multi_reduction <add>, %20, %cst_14 [1] : vector<1x32x2xf32> to vector<1x2xf32>
    %22 = vector.shape_cast %21 : vector<1x2xf32> to vector<1x1x2xf32>
    %23 = vector.shape_cast %15 : vector<1x2xf32> to vector<1x1x2xf32>
    %24 = arith.addf %22, %23 : vector<1x1x2xf32>
    %cst_15 = arith.constant 0.000000e+00 : f32
    %25 = vector.broadcast %cst_15 : f32 to vector<1x1x2xf32>
    %26 = arith.maximumf %24, %25 : vector<1x1x2xf32>
    %27 = vector.shape_cast %16 : vector<32x2xf32> to vector<1x32x2xf32>
    %28 = vector.broadcast %26 : vector<1x1x2xf32> to vector<1x32x2xf32>
    %29 = arith.mulf %27, %28 : vector<1x32x2xf32>
    %cst_16 = arith.constant dense<0.000000e+00> : vector<1x32xf32>
    %30 = vector.multi_reduction <add>, %29, %cst_16 [2] : vector<1x32x2xf32> to vector<1x32xf32>
    %31 = vector.shape_cast %30 : vector<1x32xf32> to vector<1x32x1xf32>
    %32 = vector.shape_cast %17 : vector<32x1xf32> to vector<1x32x1xf32>
    %33 = arith.addf %31, %32 : vector<1x32x1xf32>
    %34 = arith.negf %33 : vector<1x32x1xf32>
    %35 = math.exp %34 : vector<1x32x1xf32>
    %cst_17 = arith.constant 1.000000e+00 : f32
    %36 = vector.broadcast %cst_17 : f32 to vector<1x32x1xf32>
    %37 = arith.addf %36, %35 : vector<1x32x1xf32>
    %38 = arith.divf %36, %37 : vector<1x32x1xf32>
    %39 = vector.broadcast %38 : vector<1x32x1xf32> to vector<1x32x64xf32>
    %40 = arith.mulf %0, %39 : vector<1x32x64xf32>
    %c0_18 = arith.constant 0 : index
    %c0_19 = arith.constant 0 : index
    %c0_20 = arith.constant 0 : index
    %41 = vector.load %arg7[%c0_18, %c0_19, %c0_20] : memref<1x32x64xf32, #tpu.memory_space<vmem>>, vector<1x32x64xf32>
    tpu.vector_store %arg7[%c0_18, %c0_19, %c0_20], %40 {strides = array<i32>} : memref<1x32x64xf32, #tpu.memory_space<vmem>>, vector<1x32x64xf32>,
    return
  }
  func.func @transform_0(%arg0: i32) -> i32 {
    %c0_i32 = arith.constant 0 : i32
    %c0_i32_0 = arith.constant 0 : i32
    return %c0_i32 : i32
  }
  func.func @transform_1(%arg0: i32) -> (i32, i32, i32) {
    %c0_i32 = arith.constant 0 : i32
    %c0_i32_0 = arith.constant 0 : i32
    %c0_i32_1 = arith.constant 0 : i32
    return %arg0, %c0_i32, %c0_i32_0 : i32, i32, i32
  }
  func.func @transform_2(%arg0: i32) -> (i32, i32) {
    %c0_i32 = arith.constant 0 : i32
    %c0_i32_0 = arith.constant 0 : i32
    %c0_i32_1 = arith.constant 0 : i32
    return %c0_i32, %c0_i32_0 : i32, i32
  }
  func.func @transform_3(%arg0: i32) -> (i32, i32) {
    %c0_i32 = arith.constant 0 : i32
    %c0_i32_0 = arith.constant 0 : i32
    %c0_i32_1 = arith.constant 0 : i32
    return %c0_i32, %c0_i32_0 : i32, i32
  }
  func.func @transform_4(%arg0: i32) -> (i32, i32) {
    %c0_i32 = arith.constant 0 : i32
    %c0_i32_0 = arith.constant 0 : i32
    %c0_i32_1 = arith.constant 0 : i32
    return %c0_i32, %c0_i32_0 : i32, i32
  }
  func.func @transform_5(%arg0: i32) -> (i32, i32) {
    %c0_i32 = arith.constant 0 : i32
    %c0_i32_0 = arith.constant 0 : i32
    %c0_i32_1 = arith.constant 0 : i32
    return %c0_i32, %c0_i32_0 : i32, i32
  }
  func.func @transform_6(%arg0: i32) -> (i32, i32, i32) {
    %c0_i32 = arith.constant 0 : i32
    %c0_i32_0 = arith.constant 0 : i32
    %c0_i32_1 = arith.constant 0 : i32
    return %arg0, %c0_i32, %c0_i32_0 : i32, i32, i32
  }
}

</mosaic_0001>

<llo_original>
// kernel: tpu_custom_call.1
$region0: #{tpu_custom_call.1}
  #allocation0 [shape = 'u32[]', space=smem, size = 0x4, offset = 0x4, fixed_abs, tag = 'smem constant byte address 0x4 - core index']
  #allocation1 [shape = 'u32[144,128]{1,0:T(1,128)}', space=vmem, size = 0x12000, scoped, tag = 'internal scratch']
  #allocation2 [shape = 'f32[1]{0:T(128)S(6)}', space=smem, size = 0x200, scoped, tag = 'scoped memory for tpu_custom_call.1']
  %s0 = inlined_call_operand.<no memory space> [shape: f32[1], index: 0, kind: input, shape index: {}]
  %s1 = inlined_call_operand.vmem [shape: f32[2,32,64], index: 1, kind: input, shape index: {}]
  %s2 = inlined_call_operand.vmem [shape: f32[32,2], index: 2, kind: input, shape index: {}]
  %s3 = inlined_call_operand.vmem [shape: f32[1,2], index: 3, kind: input, shape index: {}]
  %s4 = inlined_call_operand.vmem [shape: f32[32,2], index: 4, kind: input, shape index: {}]
  %s5 = inlined_call_operand.vmem [shape: f32[32,1], index: 5, kind: input, shape index: {}]
  %s6 = inlined_call_operand.hbm [shape: f32[2,32,64], index: 6, kind: output, shape index: {}]
  %s7 = sld [smem:[#allocation0]]
  $region57: #{tpu_custom_call.1} parent=0
    _
  %s9 = ssub.s32 1, %s7
  %s10 = scalar_select 0, %s9, %s7
  %11 = sst [smem:[#allocation2]] %s0
  $region1: #{tpu_custom_call.1} parent=0
    #allocation3 [shape = 'u8[32768]{0}', space=vmem, size = 0x8000, scoped, tag = 'output window, operand 0']
    #allocation4 [shape = 's32[2]{0}', space=sflag, size = 0x8, scoped, tag = 'scoped memory for tpu_custom_call.1']
    %12 = vsyncpa [#allocation4], 0
    %s13 = scalar_lea.sflag [#allocation4], 1
    %14 = vsyncpa %s13, 0
    loop: start=0, step=1, limit=4
    $region2: #{tpu_custom_call.1} parent=1 // loop_pre_header
      _
    $region3: #{tpu_custom_call.1} parent=1 // loop_header
      %s16 = sphi 0, %s20
      %p17 = scmp.ge.s32.totalorder %s16, 4
      %s24 = sphi 0, %s24
      %s26 = sphi 0, %s24
      %s27 = sphi 0, %s26
      %s41 = sphi 0, %s27
      %s47 = sphi 0, %s49
      %s50 = sphi 0, %s47
      %s51 = sphi 0, %s50
      %s67 = sphi 0, %s51
      %s71 = sphi 0, %s71
      %s73 = sphi 0, %s71
      %s74 = sphi 0, %s73
      %s88 = sphi 0, %s74
      %s92 = sphi 0, %s92
      %s94 = sphi 0, %s92
      %s95 = sphi 0, %s94
      %s109 = sphi 0, %s95
      %s113 = sphi 0, %s113
      %s115 = sphi 0, %s113
      %s116 = sphi 0, %s115
      %s130 = sphi 0, %s116
      %s134 = sphi 0, %s134
      %s136 = sphi 0, %s134
      %s137 = sphi 0, %s136
      %s151 = sphi 0, %s137
      %s157 = sphi 0, %s159
      %s160 = sphi 0, %s157
      %s161 = sphi 0, %s160
      %s177 = sphi 0, %s161
    $region4: #{tpu_custom_call.1} parent=1 // loop_header_branch
      %19 = sbr.rel (%p17) target = $region8
    $region5: #{tpu_custom_call.1} parent=1 // loop_body
      %s21 = ssub.s32 %s16, 1
      %s22 = ssub.s32 %s16, 2
      %s23 = sadd.s32 %s16, 1
      %s25 = sadd.s32 %s24, 1
      %p28 = scmp.eq.s32.totalorder %s16, 1
      %p29 = scmp.ne.s32.totalorder %s24, %s26
      %p30 = scmp.eq.s32.totalorder %s16, 0
      %p31 = por %p29, %p30
      %p32 = scmp.ne.s32.totalorder %s24, %s26
      %p33 = scmp.eq.s32.totalorder %s21, 1
      %p34 = por %p32, %p33
      %p35 = scmp.ne.s32.totalorder %s26, %s27
      %p36 = scmp.eq.s32.totalorder %s21, 0
      %p37 = por %p35, %p36
      %p38 = scmp.ne.s32.totalorder %s26, %s27
      %p39 = scmp.eq.s32.totalorder %s22, 1
      %p40 = por %p38, %p39
      %p42 = scmp.ne.s32.totalorder %s27, %s41
      %p43 = scmp.eq.s32.totalorder %s22, 0
      %p44 = por %p42, %p43
      %s45 = ssub.s32 %s16, %s23
      %p46 = scmp.eq.s32.totalorder %s45, 0
      %s48 = sadd.s32 %s47, 1
      %s49 = scalar_select %p46, %s47, %s48
      %p52 = pneg %p46
      %p53 = scmp.eq.s32.totalorder %s16, 1
      %p54 = por %p52, %p53
      %p55 = scmp.ne.s32.totalorder %s47, %s50
      %p56 = scmp.eq.s32.totalorder %s16, 0
      %p57 = por %p55, %p56
      %p58 = scmp.ne.s32.totalorder %s47, %s50
      %p59 = scmp.eq.s32.totalorder %s21, 1
      %p60 = por %p58, %p59
      %p61 = scmp.ne.s32.totalorder %s50, %s51
      %p62 = scmp.eq.s32.totalorder %s21, 0
      %p63 = por %p61, %p62
      %p64 = scmp.ne.s32.totalorder %s50, %s51
      %p65 = scmp.eq.s32.totalorder %s22, 1
      %p66 = por %p64, %p65
      %p68 = scmp.ne.s32.totalorder %s51, %s67
      %p69 = scmp.eq.s32.totalorder %s22, 0
      %p70 = por %p68, %p69
      %s72 = sadd.s32 %s71, 1
      %p75 = scmp.eq.s32.totalorder %s16, 1
      %p76 = scmp.ne.s32.totalorder %s71, %s73
      %p77 = scmp.eq.s32.totalorder %s16, 0
      %p78 = por %p76, %p77
      %p79 = scmp.ne.s32.totalorder %s71, %s73
      %p80 = scmp.eq.s32.totalorder %s21, 1
      %p81 = por %p79, %p80
      %p82 = scmp.ne.s32.totalorder %s73, %s74
      %p83 = scmp.eq.s32.totalorder %s21, 0
      %p84 = por %p82, %p83
      %p85 = scmp.ne.s32.totalorder %s73, %s74
      %p86 = scmp.eq.s32.totalorder %s22, 1
      %p87 = por %p85, %p86
      %p89 = scmp.ne.s32.totalorder %s74, %s88
      %p90 = scmp.eq.s32.totalorder %s22, 0
      %p91 = por %p89, %p90
      %s93 = sadd.s32 %s92, 1
      %p96 = scmp.eq.s32.totalorder %s16, 1
      %p97 = scmp.ne.s32.totalorder %s92, %s94
      %p98 = scmp.eq.s32.totalorder %s16, 0
      %p99 = por %p97, %p98
      %p100 = scmp.ne.s32.totalorder %s92, %s94
      %p101 = scmp.eq.s32.totalorder %s21, 1
      %p102 = por %p100, %p101
      %p103 = scmp.ne.s32.totalorder %s94, %s95
      %p104 = scmp.eq.s32.totalorder %s21, 0
      %p105 = por %p103, %p104
      %p106 = scmp.ne.s32.totalorder %s94, %s95
      %p107 = scmp.eq.s32.totalorder %s22, 1
      %p108 = por %p106, %p107
      %p110 = scmp.ne.s32.totalorder %s95, %s109
      %p111 = scmp.eq.s32.totalorder %s22, 0
      %p112 = por %p110, %p111
      %s114 = sadd.s32 %s113, 1
      %p117 = scmp.eq.s32.totalorder %s16, 1
      %p118 = scmp.ne.s32.totalorder %s113, %s115
      %p119 = scmp.eq.s32.totalorder %s16, 0
      %p120 = por %p118, %p119
      %p121 = scmp.ne.s32.totalorder %s113, %s115
      %p122 = scmp.eq.s32.totalorder %s21, 1
      %p123 = por %p121, %p122
      %p124 = scmp.ne.s32.totalorder %s115, %s116
      %p125 = scmp.eq.s32.totalorder %s21, 0
      %p126 = por %p124, %p125
      %p127 = scmp.ne.s32.totalorder %s115, %s116
      %p128 = scmp.eq.s32.totalorder %s22, 1
      %p129 = por %p127, %p128
      %p131 = scmp.ne.s32.totalorder %s116, %s130
      %p132 = scmp.eq.s32.totalorder %s22, 0
      %p133 = por %p131, %p132
      %s135 = sadd.s32 %s134, 1
      %p138 = scmp.eq.s32.totalorder %s16, 1
      %p139 = scmp.ne.s32.totalorder %s134, %s136
      %p140 = scmp.eq.s32.totalorder %s16, 0
      %p141 = por %p139, %p140
      %p142 = scmp.ne.s32.totalorder %s134, %s136
      %p143 = scmp.eq.s32.totalorder %s21, 1
      %p144 = por %p142, %p143
      %p145 = scmp.ne.s32.totalorder %s136, %s137
      %p146 = scmp.eq.s32.totalorder %s21, 0
      %p147 = por %p145, %p146
      %p148 = scmp.ne.s32.totalorder %s136, %s137
      %p149 = scmp.eq.s32.totalorder %s22, 1
      %p150 = por %p148, %p149
      %p152 = scmp.ne.s32.totalorder %s137, %s151
      %p153 = scmp.eq.s32.totalorder %s22, 0
      %p154 = por %p152, %p153
      %s155 = ssub.s32 %s16, %s23
      %p156 = scmp.eq.s32.totalorder %s155, 0
      %s158 = sadd.s32 %s157, 1
      %s159 = scalar_select %p156, %s157, %s158
      %p162 = pneg %p156
      %p163 = scmp.eq.s32.totalorder %s16, 1
      %p164 = por %p162, %p163
      %p165 = scmp.ne.s32.totalorder %s157, %s160
      %p166 = scmp.eq.s32.totalorder %s16, 0
      %p167 = por %p165, %p166
      %p168 = scmp.ne.s32.totalorder %s157, %s160
      %p169 = scmp.eq.s32.totalorder %s21, 1
      %p170 = por %p168, %p169
      %p171 = scmp.ne.s32.totalorder %s160, %s161
      %p172 = scmp.eq.s32.totalorder %s21, 0
      %p173 = por %p171, %p172
      %p174 = scmp.ne.s32.totalorder %s160, %s161
      %p175 = scmp.eq.s32.totalorder %s22, 1
      %p176 = por %p174, %p175
      %p178 = scmp.ne.s32.totalorder %s161, %s177
      %p179 = scmp.eq.s32.totalorder %s22, 0
      %p180 = por %p178, %p179
      %p181 = scmp.le.s32.totalorder 1, %s16
      %p182 = scmp.lt.s32.totalorder %s16, 3
      %p183 = pnand %p181, %p182
      %p184 = pneg %p183
      // Predicated region
      $region9: #{tpu_custom_call.1} parent=5 // pred_check
        _
      $region10: #{tpu_custom_call.1} parent=5 // pred_check_branch
        %186 = sbr.rel (%p183) target = $region12
      $region11: #{tpu_custom_call.1} parent=5 // pred_region
        %s187 = ssub.s32 %s16, 1
        // Predicated region
        $region13: #{tpu_custom_call.1} parent=11 // pred_check
          %p188 = pneg %p37
        $region14: #{tpu_custom_call.1} parent=11 // pred_check_branch
          %190 = sbr.rel (%p188) target = $region16
        $region15: #{tpu_custom_call.1} parent=11 // pred_region
          _
        $region16: #{tpu_custom_call.1} parent=11 // pred_fallthru
          _
        // Predicated region
        $region17: #{tpu_custom_call.1} parent=11 // pred_check
          %p191 = pneg %p84
        $region18: #{tpu_custom_call.1} parent=11 // pred_check_branch
          %193 = sbr.rel (%p191) target = $region20
        $region19: #{tpu_custom_call.1} parent=11 // pred_region
          _
        $region20: #{tpu_custom_call.1} parent=11 // pred_fallthru
          _
        // Predicated region
        $region21: #{tpu_custom_call.1} parent=11 // pred_check
          %p194 = pneg %p105
        $region22: #{tpu_custom_call.1} parent=11 // pred_check_branch
          %196 = sbr.rel (%p194) target = $region24
        $region23: #{tpu_custom_call.1} parent=11 // pred_region
          _
        $region24: #{tpu_custom_call.1} parent=11 // pred_fallthru
          _
        // Predicated region
        $region25: #{tpu_custom_call.1} parent=11 // pred_check
          %p197 = pneg %p126
        $region26: #{tpu_custom_call.1} parent=11 // pred_check_branch
          %199 = sbr.rel (%p197) target = $region28
        $region27: #{tpu_custom_call.1} parent=11 // pred_region
          _
        $region28: #{tpu_custom_call.1} parent=11 // pred_fallthru
          _
        // Predicated region
        $region29: #{tpu_custom_call.1} parent=11 // pred_check
          %p200 = pneg %p147
        $region30: #{tpu_custom_call.1} parent=11 // pred_check_branch
          %202 = sbr.rel (%p200) target = $region32
        $region31: #{tpu_custom_call.1} parent=11 // pred_region
          _
        $region32: #{tpu_custom_call.1} parent=11 // pred_fallthru
          _
      $region12: #{tpu_custom_call.1} parent=5 // pred_fallthru
        _
      %p203 = scmp.lt.s32.totalorder %s16, 2
      // Predicated region
      $region33: #{tpu_custom_call.1} parent=5 // pred_check
        %p204 = pneg %p203
      $region34: #{tpu_custom_call.1} parent=5 // pred_check_branch
        %206 = sbr.rel (%p204) target = $region36
      $region35: #{tpu_custom_call.1} parent=5 // pred_region
        // Predicated region
        $region37: #{tpu_custom_call.1} parent=35 // pred_check
          %p207 = pneg %p57
        $region38: #{tpu_custom_call.1} parent=35 // pred_check_branch
          %209 = sbr.rel (%p207) target = $region40
        $region39: #{tpu_custom_call.1} parent=35 // pred_region
          %p210 = scmp.lt.s32.totalorder %s16, 1
          %s211 = scalar_select %p210, %s16, 1
          %s212 = smul.addr %s211, 4
          %s213 = smul.addr %s212, 8
          %s214 = scalar_lea.vmem %s1, %s213
        $region40: #{tpu_custom_call.1} parent=35 // pred_fallthru
          _
      $region36: #{tpu_custom_call.1} parent=5 // pred_fallthru
        _
      %p215 = scmp.le.s32.totalorder 1, %s16
      %p216 = scmp.lt.s32.totalorder %s16, 3
      %p217 = pnand %p215, %p216
      %p218 = pneg %p217
      // Predicated region
      $region41: #{tpu_custom_call.1} parent=5 // pred_check
        _
      $region42: #{tpu_custom_call.1} parent=5 // pred_check_branch
        %220 = sbr.rel (%p217) target = $region44
      $region43: #{tpu_custom_call.1} parent=5 // pred_region
        %s221 = ssub.s32 %s16, 1
        %p222 = pneg %p37
        %p223 = pneg %p34
        %p224 = scmp.lt.s32.totalorder %s21, 1
        %s225 = scalar_select %p224, %s21, 1
        %s226 = smul.addr %s225, 4
        %s227 = smul.addr %s226, 8
        %s228 = scalar_lea.vmem %s1, %s227
        %p229 = pneg %p63
        %p230 = pneg %p60
        %p231 = pneg %p84
        %p232 = pneg %p81
        %p233 = pneg %p105
        %p234 = pneg %p102
        %p235 = pneg %p126
        %p236 = pneg %p123
        %p237 = pneg %p147
        %p238 = pneg %p144
        %p239 = pneg %p173
        %p240 = pneg %p170
        %s241 = sand.u32 %s160, 1
        %s242 = scalar_lea.sflag [#allocation4], %s241
        %s243 = sand.u32 %s160, 1
        %s244 = smul.addr %s243, 32
        %s245 = scalar_lea.vmem [#allocation3], %s244
        %p246 = scmp.lt.s32.totalorder %s21, 1
        %s247 = scalar_select %p246, %s21, 1
        %s248 = smul.addr %s247, 4
        %s249 = smul.addr %s248, 8
        %s250 = scalar_lea.vmem %s1, %s249
        %v251 = vld [vmem:[%s250] sm:$0xff]
        %v252 = vld [vmem:[%s250 + $0x8] sm:$0xff]
        %v253 = vld [vmem:[%s250 + $0x10] sm:$0xff]
        %v254 = vld [vmem:[%s250 + $0x18] sm:$0xff]
        %s255 = sld [smem:[#allocation2]]
        %vm256 = vcmask 523264
        %v257 = vsel %vm256, %v251, 0.0
        %258 = vadd.xlane.f32.xlu0 %v257
        %v259 = vpop.xlane.xlu0 %258
        %v260 = vsel %vm256, %v252, 0.0
        %261 = vadd.xlane.f32.xlu0 %v260
        %v262 = vpop.xlane.xlu0 %261
        %v263 = vsel %vm256, %v253, 0.0
        %264 = vadd.xlane.f32.xlu0 %v263
        %v265 = vpop.xlane.xlu0 %264
        %v266 = vsel %vm256, %v254, 0.0
        %267 = vadd.xlane.f32.xlu0 %v266
        %v268 = vpop.xlane.xlu0 %267
        %v269 = vrcp.pop 64.0
        %v270 = vmul.f32 %v259, %v269
        %v271 = vmul.f32 %v262, %v269
        %v272 = vmul.f32 %v265, %v269
        %v273 = vmul.f32 %v268, %v269
        %v274 = vsel %vm256, %v251, -inf
        %275 = vmax.xlane.f32.xlu0 %v274
        %v276 = vpop.xlane.xlu0 %275
        %v277 = vsel %vm256, %v252, -inf
        %278 = vmax.xlane.f32.xlu0 %v277
        %v279 = vpop.xlane.xlu0 %278
        %v280 = vsel %vm256, %v253, -inf
        %281 = vmax.xlane.f32.xlu0 %v280
        %v282 = vpop.xlane.xlu0 %281
        %v283 = vsel %vm256, %v254, -inf
        %284 = vmax.xlane.f32.xlu0 %v283
        %v285 = vpop.xlane.xlu0 %284
        %v286 = vstv %s255
        %v287 = vmul.f32 %v286, %v270
        %v288 = vmul.f32 %v286, %v271
        %v289 = vmul.f32 %v286, %v272
        %v290 = vmul.f32 %v286, %v273
        %s291 = ssub.f32 1.0, %s255
        %v292 = vstv %s291
        %v293 = vmul.f32 %v292, %v276
        %v294 = vmul.f32 %v292, %v279
        %v295 = vmul.f32 %v292, %v282
        %v296 = vmul.f32 %v292, %v285
        %v297 = vadd.f32 %v287, %v293
        %v298 = vadd.f32 %v288, %v294
        %v299 = vadd.f32 %v289, %v295
        %v300 = vadd.f32 %v290, %v296
        %v301 = vld [vmem:[%s2] sm:$0xff]
        %v302 = vld [vmem:[%s2 + $0x8] sm:$0xff]
        %v303 = vld [vmem:[%s2 + $0x10] sm:$0xff]
        %v304 = vld [vmem:[%s2 + $0x18] sm:$0xff]
        %v305 = vld [vmem:[%s3] sm:$0x1]
        %v306 = vld [vmem:[%s4] sm:$0xff]
        %v307 = vld [vmem:[%s4 + $0x8] sm:$0xff]
        %v308 = vld [vmem:[%s4 + $0x10] sm:$0xff]
        %v309 = vld [vmem:[%s4 + $0x18] sm:$0xff]
        %v310 = vld [vmem:[%s5] sm:$0xff]
        %v311 = vld [vmem:[%s5 + $0x8] sm:$0xff]
        %v312 = vld [vmem:[%s5 + $0x10] sm:$0xff]
        %v313 = vld [vmem:[%s5 + $0x18] sm:$0xff]
        %v314 = vmul.f32 %v301, %v297
        %v315 = vmul.f32 %v302, %v298
        %v316 = vmul.f32 %v303, %v299
        %v317 = vmul.f32 %v304, %v300
        %vm318 = vcmask 15360
        %v319 = vsel %vm318, %v314, 0.0
        %v320 = vsel %vm318, %v315, 0.0
        %v321 = vadd.f32 %v319, %v320
        %v322 = vsel %vm318, %v316, 0.0
        %v323 = vadd.f32 %v321, %v322
        %v324 = vsel %vm318, %v317, 0.0
        %v325 = vadd.f32 %v323, %v324
        %v326 = vrot.slane %v325, 4
        %v327 = vadd.f32 %v325, %v326
        %v328 = vrot.slane %v327, 2
        %v329 = vadd.f32 %v327, %v328
        %v330 = vrot.slane %v329, 1
        %v331 = vadd.f32 %v329, %v330
        %v332 = vadd.f32 %v331, %v305
        %v333 = vmax.f32 %v332, 0.0
        %v334 = vlaneseq
        %v335 = vshrl.u32 %v334, 7
        %v336 = vsub.s32 0, %v335
        %v337 = vrot.slane %v333, %v336
        %v338 = vmul.f32 %v306, %v337
        %v339 = vmul.f32 %v307, %v337
        %v340 = vmul.f32 %v308, %v337
        %v341 = vmul.f32 %v309, %v337
        %v342 = vsel %vm318, %v338, 0.0
        %343 = vadd.xlane.f32.xlu0 %v342
        %v344 = vpop.xlane.xlu0 %343
        %v345 = vsel %vm318, %v339, 0.0
        %346 = vadd.xlane.f32.xlu0 %v345
        %v347 = vpop.xlane.xlu0 %346
        %v348 = vsel %vm318, %v340, 0.0
        %349 = vadd.xlane.f32.xlu0 %v348
        %v350 = vpop.xlane.xlu0 %349
        %v351 = vsel %vm318, %v341, 0.0
        %352 = vadd.xlane.f32.xlu0 %v351
        %v353 = vpop.xlane.xlu0 %352
        %v354 = vadd.f32 %v344, %v310
        %v355 = vadd.f32 %v347, %v311
        %v356 = vadd.f32 %v350, %v312
        %v357 = vadd.f32 %v353, %v313
        %v358 = vxor.u32 %v354, 2147483648
        %v359 = vxor.u32 %v355, 2147483648
        %v360 = vxor.u32 %v356, 2147483648
        %v361 = vxor.u32 %v357, 2147483648
        %v362 = vmul.f32 %v358, 1.442695
        %v363 = vpow.pop %v362
        %v364 = vmul.f32 %v359, 1.442695
        %v365 = vpow.pop %v364
        %v366 = vmul.f32 %v360, 1.442695
        %v367 = vpow.pop %v366
        %v368 = vmul.f32 %v361, 1.442695
        %v369 = vpow.pop %v368
        %v370 = vadd.f32 %v363, 1.0
        %v371 = vadd.f32 %v365, 1.0
        %v372 = vadd.f32 %v367, 1.0
        %v373 = vadd.f32 %v369, 1.0
        %v374 = vrcp.pop %v370
        %v375 = vmul.f32 1.0, %v374
        %v376 = vrcp.pop %v371
        %v377 = vmul.f32 1.0, %v376
        %v378 = vrcp.pop %v372
        %v379 = vmul.f32 1.0, %v378
        %v380 = vrcp.pop %v373
        %v381 = vmul.f32 1.0, %v380
        %383 = vset.pattern.permute.xlu0 0
        %384 = vperm.xlu0 %383, %v375
        %v385 = vpop.permute.xlu0 %384
        %388 = vset.pattern.permute.xlu0 0
        %389 = vperm.xlu0 %388, %v377
        %v390 = vpop.permute.xlu0 %389
        %393 = vset.pattern.permute.xlu0 0
        %394 = vperm.xlu0 %393, %v379
        %v395 = vpop.permute.xlu0 %394
        %398 = vset.pattern.permute.xlu0 0
        %399 = vperm.xlu0 %398, %v381
        %v400 = vpop.permute.xlu0 %399
        %v402 = vmul.f32 %v251, %v385
        %v403 = vmul.f32 %v252, %v390
        %v404 = vmul.f32 %v253, %v395
        %v405 = vmul.f32 %v254, %v400
        %406 = vst.msk [vmem:[%s245] sm:$0xff] %vm256, %v402
        %407 = vst.msk [vmem:[%s245 + $0x8] sm:$0xff] %vm256, %v403
        %408 = vst.msk [vmem:[%s245 + $0x10] sm:$0xff] %vm256, %v404
        %409 = vst.msk [vmem:[%s245 + $0x18] sm:$0xff] %vm256, %v405
        %s410 = sand.u32 %s160, 1
        %s411 = scalar_lea.sflag [#allocation4], %s410
        %s412 = sand.u32 %s160, 1
        %s413 = smul.addr %s412, 32
        %s414 = scalar_lea.vmem [#allocation3], %s413
        // Predicated region
        $region45: #{tpu_custom_call.1} parent=43 // pred_check
          %p415 = pneg %p170
        $region46: #{tpu_custom_call.1} parent=43 // pred_check_branch
          %417 = sbr.rel (%p415) target = $region48
        $region47: #{tpu_custom_call.1} parent=43 // pred_region
          %s419 = ssub.s32 512, 512
          %420 = vsyncadd %s411, %s419
          %s421 = smul.addr %s21, 4
          %s422 = smul.addr %s421, 128
          %s423 = scalar_lea.hbm %s6, %s422
          %s424 = sshll.u32 %s414, 4
          %s425 = int_to_ptr.vmem [resolvable:$true] %s424
          %430 = dma.vmem_to_hbm [thread:$0]  %s425, 512, %s423, %s411, 128, 128, 8
        $region48: #{tpu_custom_call.1} parent=43 // pred_fallthru
          _
      $region44: #{tpu_custom_call.1} parent=5 // pred_fallthru
        _
      %p431 = scmp.le.s32.totalorder 2, %s16
      // Predicated region
      $region49: #{tpu_custom_call.1} parent=5 // pred_check
        %p432 = pneg %p431
      $region50: #{tpu_custom_call.1} parent=5 // pred_check_branch
        %434 = sbr.rel (%p432) target = $region52
      $region51: #{tpu_custom_call.1} parent=5 // pred_region
        %s435 = ssub.s32 %s16, 2
        // Predicated region
        $region53: #{tpu_custom_call.1} parent=51 // pred_check
          %p436 = pneg %p176
        $region54: #{tpu_custom_call.1} parent=51 // pred_check_branch
          %438 = sbr.rel (%p436) target = $region56
        $region55: #{tpu_custom_call.1} parent=51 // pred_region
          %s439 = sand.u32 %s161, 1
          %s440 = scalar_lea.sflag [#allocation4], %s439
          %s441 = sand.u32 %s161, 1
          %s442 = smul.addr %s441, 32
          %s443 = scalar_lea.vmem [#allocation3], %s442
          %444 = dma.done %s440, 512
        $region56: #{tpu_custom_call.1} parent=51 // pred_fallthru
          _
      $region52: #{tpu_custom_call.1} parent=5 // pred_fallthru
        _
    $region6: #{tpu_custom_call.1} parent=1 // loop_footer
      %s20 = sadd.s32 1, %s16
    $region7: #{tpu_custom_call.1} parent=1 // loop_footer_branch
      %15 = sbr.rel target = $region3
    $region8: #{tpu_custom_call.1} parent=1 // loop_exit
      _
    %445 = vsyncpa [#allocation4], 1
    %s446 = scalar_lea.sflag [#allocation4], 1
    %447 = vsyncpa %s446, 1

</llo_original>
